<compile_context>
chip_gen: v5e
topology: v5e:2x2
jax: 0.10.0
libtpu: 0.0.40
codegen_flags: <defaults>
</compile_context>

<pallas_src>
import jax
import jax.numpy as jnp
from jax import lax
from jax.experimental import pallas as pl
from jax.experimental.pallas import tpu as pltpu


def perceptual_loss(pred, target):
    N, C, H, W = pred.shape
    assert target.shape == pred.shape
    assert C >= 3, "Sobel grayscale needs at least 3 channels"

    inv_full = 1.0 / float(N * C * H * W)   # denominator for MSE / L1
    inv_edge = 1.0 / float(N * 1 * H * W)   # denominator for edge MSE (N,1,H,W)

    def kernel(pred_ref, tgt_ref, out_ref):
        # ---------- MSE / L1: per-channel accumulation, reduction deferred.
        def chan_body(c, carry):
            acc_sq, acc_ab = carry
            d = (pred_ref[0, c].astype(jnp.float32)
                 - tgt_ref[0, c].astype(jnp.float32))
            return acc_sq + d * d, acc_ab + jnp.abs(d)

        acc_sq, acc_ab = lax.fori_loop(
            0, C, chan_body,
            (jnp.zeros((H, W), jnp.float32), jnp.zeros((H, W), jnp.float32)),
            unroll=True)

        # ---------- Sobel edge term: roll-based separable 3x3 conv, pad=1.
        row = lax.broadcasted_iota(jnp.int32, (H, W), 0)   # hoisted, reused
        col = lax.broadcasted_iota(jnp.int32, (H, W), 1)

        def shift(a, s, axis):
            # result[.. i ..] = a[.. i - s ..] along `axis`, zero outside.
            n = H if axis == 0 else W
            idx = row if axis == 0 else col
            r = pltpu.roll(a, shift=s % n, axis=axis)   # XLU rotate
            mask = (idx >= s) if s > 0 else (idx < n + s)
            return jnp.where(mask, r, 0.0)

        def gray(ref):
            return (0.299 * ref[0, 0].astype(jnp.float32)
                    + 0.587 * ref[0, 1].astype(jnp.float32)
                    + 0.114 * ref[0, 2].astype(jnp.float32))

        def sobel_mag(g):
            gl = shift(g, -1, 1)            # g[i, j+1]
            gr = shift(g, 1, 1)             # g[i, j-1]
            t = gl - gr                     # horizontal [-1, 0, 1]
            u = gr + 2.0 * g + gl           # horizontal [ 1, 2, 1]
            ex = shift(t, 1, 0) + 2.0 * t + shift(t, -1, 0)   # vertical [1,2,1]
            ey = shift(u, -1, 0) - shift(u, 1, 0)             # vertical [-1,0,1]
            return jnp.sqrt(ex * ex + ey * ey)

        ediff = sobel_mag(gray(pred_ref)) - sobel_mag(gray(tgt_ref))

        # ---------- Single reduction of the pre-normalized per-pixel loss.
        per_pixel = (inv_full * (acc_sq + 0.1 * acc_ab)
                     + (0.2 * inv_edge) * (ediff * ediff))
        contrib = jnp.sum(per_pixel, keepdims=True)            # (1, 1)

        # Lane-dense (8,128) store of this batch's partial; wrapper reads [:,0,0].
        out_ref[...] = jnp.broadcast_to(contrib.reshape(1, 1, 1), (1, 8, 128))

    partials = pl.pallas_call(
        kernel,
        out_shape=jax.ShapeDtypeStruct((N, 8, 128), jnp.float32),
        grid_spec=pltpu.PrefetchScalarGridSpec(
            num_scalar_prefetch=0,
            grid=(N,),
            in_specs=[
                pl.BlockSpec((1, C, H, W), lambda b: (b, 0, 0, 0)),
                pl.BlockSpec((1, C, H, W), lambda b: (b, 0, 0, 0)),
            ],
            out_specs=pl.BlockSpec((1, 8, 128), lambda b: (b, 0, 0)),
        ),
        compiler_params=pltpu.CompilerParams(
            dimension_semantics=("parallel",)),
    )(pred, target)   # native dtype in; cast happens inside the kernel

    return jnp.sum(partials[:, 0, 0])


def _reference_loss(pred, target):
    """Pure-JAX reference, mirrors the PyTorch module exactly."""
    kx = jnp.array([[-1., 0., 1.], [-2., 0., 2.], [-1., 0., 1.]],
                   jnp.float32).reshape(1, 1, 3, 3)
    ky = jnp.array([[-1., -2., -1.], [0., 0., 0.], [1., 2., 1.]],
                   jnp.float32).reshape(1, 1, 3, 3)

    def sobel(x):
        gray = 0.299 * x[:, 0:1] + 0.587 * x[:, 1:2] + 0.114 * x[:, 2:3]
        ex = jax.lax.conv_general_dilated(
            gray, kx, (1, 1), ((1, 1), (1, 1)),
            dimension_numbers=("NCHW", "OIHW", "NCHW"))
        ey = jax.lax.conv_general_dilated(
            gray, ky, (1, 1), ((1, 1), (1, 1)),
            dimension_numbers=("NCHW", "OIHW", "NCHW"))
        return jnp.sqrt(ex ** 2 + ey ** 2)

    mse = jnp.mean((pred - target) ** 2)
    l1 = jnp.mean(jnp.abs(pred - target))
    edge = jnp.mean((sobel(pred) - sobel(target)) ** 2)
    return mse + 0.1 * l1 + 0.2 * edge


if __name__ == "__main__":
    key = jax.random.PRNGKey(0)
    k1, k2 = jax.random.split(key)
    pred = jax.random.normal(k1, (2, 4, 16, 16), dtype=jnp.float32)
    target = jax.random.normal(k2, (2, 4, 16, 16), dtype=jnp.float32)

    loss = perceptual_loss(pred, target)
    jax.block_until_ready(loss)

    ref = _reference_loss(pred, target)
    assert jnp.allclose(loss, ref, rtol=1e-4, atol=1e-5), (float(loss), float(ref))
    print("KERNEL_OK")
</pallas_src>

<mosaic_0001>
module attributes {stable_mosaic.version = 11 : i64} {
  func.func @kernel(%arg0: i32, %arg1: memref<1x4x16x16xf32, #tpu.memory_space<vmem>>, %arg2: memref<1x4x16x16xf32, #tpu.memory_space<vmem>>, %arg3: memref<1x8x128xf32, #tpu.memory_space<vmem>>) attributes {dimension_semantics = [#tpu.dimension_semantics<parallel>], iteration_bounds = array<i64: 2>, scalar_prefetch = 0 : i64, scratch_operands = 0 : i64, tpu.core_type = #tpu.core_type<tc>, window_params = [{transform_indices = @transform_0, window_bounds = array<i64: 1, 4, 16, 16>}, {transform_indices = @transform_1, window_bounds = array<i64: 1, 4, 16, 16>}, {transform_indices = @transform_2, window_bounds = array<i64: 1, 8, 128>}]} {
    %cst = arith.constant 0.000000e+00 : f32
    %0 = vector.broadcast %cst : f32 to vector<16x16xf32>
    %cst_0 = arith.constant 0.000000e+00 : f32
    %1 = vector.broadcast %cst_0 : f32 to vector<16x16xf32>
    %c0_i32 = arith.constant 0 : i32
    %c0 = arith.constant 0 : index
    %2 = arith.index_cast %c0_i32 : i32 to index
    %c0_1 = arith.constant 0 : index
    %c0_2 = arith.constant 0 : index
    %3 = vector.load %arg1[%c0, %2, %c0_1, %c0_2] : memref<1x4x16x16xf32, #tpu.memory_space<vmem>>, vector<1x1x16x16xf32>
    %4 = vector.shape_cast %3 : vector<1x1x16x16xf32> to vector<16x16xf32>
    %c0_3 = arith.constant 0 : index
    %5 = arith.index_cast %c0_i32 : i32 to index
    %c0_4 = arith.constant 0 : index
    %c0_5 = arith.constant 0 : index
    %6 = vector.load %arg2[%c0_3, %5, %c0_4, %c0_5] : memref<1x4x16x16xf32, #tpu.memory_space<vmem>>, vector<1x1x16x16xf32>
    %7 = vector.shape_cast %6 : vector<1x1x16x16xf32> to vector<16x16xf32>
    %8 = arith.subf %4, %7 : vector<16x16xf32>
    %9 = arith.mulf %8, %8 : vector<16x16xf32>
    %10 = arith.addf %0, %9 : vector<16x16xf32>
    %11 = math.absf %8 : vector<16x16xf32>
    %12 = arith.addf %1, %11 : vector<16x16xf32>
    %c1_i32 = arith.constant 1 : i32
    %c0_6 = arith.constant 0 : index
    %13 = arith.index_cast %c1_i32 : i32 to index
    %c0_7 = arith.constant 0 : index
    %c0_8 = arith.constant 0 : index
    %14 = vector.load %arg1[%c0_6, %13, %c0_7, %c0_8] : memref<1x4x16x16xf32, #tpu.memory_space<vmem>>, vector<1x1x16x16xf32>
    %15 = vector.shape_cast %14 : vector<1x1x16x16xf32> to vector<16x16xf32>
    %c0_9 = arith.constant 0 : index
    %16 = arith.index_cast %c1_i32 : i32 to index
    %c0_10 = arith.constant 0 : index
    %c0_11 = arith.constant 0 : index
    %17 = vector.load %arg2[%c0_9, %16, %c0_10, %c0_11] : memref<1x4x16x16xf32, #tpu.memory_space<vmem>>, vector<1x1x16x16xf32>
    %18 = vector.shape_cast %17 : vector<1x1x16x16xf32> to vector<16x16xf32>
    %19 = arith.subf %15, %18 : vector<16x16xf32>
    %20 = arith.mulf %19, %19 : vector<16x16xf32>
    %21 = arith.addf %10, %20 : vector<16x16xf32>
    %22 = math.absf %19 : vector<16x16xf32>
    %23 = arith.addf %12, %22 : vector<16x16xf32>
    %c2_i32 = arith.constant 2 : i32
    %c0_12 = arith.constant 0 : index
    %24 = arith.index_cast %c2_i32 : i32 to index
    %c0_13 = arith.constant 0 : index
    %c0_14 = arith.constant 0 : index
    %25 = vector.load %arg1[%c0_12, %24, %c0_13, %c0_14] : memref<1x4x16x16xf32, #tpu.memory_space<vmem>>, vector<1x1x16x16xf32>
    %26 = vector.shape_cast %25 : vector<1x1x16x16xf32> to vector<16x16xf32>
    %c0_15 = arith.constant 0 : index
    %27 = arith.index_cast %c2_i32 : i32 to index
    %c0_16 = arith.constant 0 : index
    %c0_17 = arith.constant 0 : index
    %28 = vector.load %arg2[%c0_15, %27, %c0_16, %c0_17] : memref<1x4x16x16xf32, #tpu.memory_space<vmem>>, vector<1x1x16x16xf32>
    %29 = vector.shape_cast %28 : vector<1x1x16x16xf32> to vector<16x16xf32>
    %30 = arith.subf %26, %29 : vector<16x16xf32>
    %31 = arith.mulf %30, %30 : vector<16x16xf32>
    %32 = arith.addf %21, %31 : vector<16x16xf32>
    %33 = math.absf %30 : vector<16x16xf32>
    %34 = arith.addf %23, %33 : vector<16x16xf32>
    %c3_i32 = arith.constant 3 : i32
    %c0_18 = arith.constant 0 : index
    %35 = arith.index_cast %c3_i32 : i32 to index
    %c0_19 = arith.constant 0 : index
    %c0_20 = arith.constant 0 : index
    %36 = vector.load %arg1[%c0_18, %35, %c0_19, %c0_20] : memref<1x4x16x16xf32, #tpu.memory_space<vmem>>, vector<1x1x16x16xf32>
    %37 = vector.shape_cast %36 : vector<1x1x16x16xf32> to vector<16x16xf32>
    %c0_21 = arith.constant 0 : index
    %38 = arith.index_cast %c3_i32 : i32 to index
    %c0_22 = arith.constant 0 : index
    %c0_23 = arith.constant 0 : index
    %39 = vector.load %arg2[%c0_21, %38, %c0_22, %c0_23] : memref<1x4x16x16xf32, #tpu.memory_space<vmem>>, vector<1x1x16x16xf32>
    %40 = vector.shape_cast %39 : vector<1x1x16x16xf32> to vector<16x16xf32>
    %41 = arith.subf %37, %40 : vector<16x16xf32>
    %42 = arith.mulf %41, %41 : vector<16x16xf32>
    %43 = arith.addf %32, %42 : vector<16x16xf32>
    %44 = math.absf %41 : vector<16x16xf32>
    %45 = arith.addf %34, %44 : vector<16x16xf32>
    %c4_i32 = arith.constant 4 : i32
    %46 = tpu.iota {dimensions = array<i32: 0>} : vector<16x16xi32>
    %47 = tpu.iota {dimensions = array<i32: 1>} : vector<16x16xi32>
    %c0_24 = arith.constant 0 : index
    %c0_25 = arith.constant 0 : index
    %c0_26 = arith.constant 0 : index
    %c0_27 = arith.constant 0 : index
    %48 = vector.load %arg1[%c0_24, %c0_25, %c0_26, %c0_27] : memref<1x4x16x16xf32, #tpu.memory_space<vmem>>, vector<1x1x16x16xf32>
    %49 = vector.shape_cast %48 : vector<1x1x16x16xf32> to vector<16x16xf32>
    %cst_28 = arith.constant 2.990000e-01 : f32
    %50 = vector.broadcast %cst_28 : f32 to vector<16x16xf32>
    %51 = arith.mulf %50, %49 : vector<16x16xf32>
    %c0_29 = arith.constant 0 : index
    %c1 = arith.constant 1 : index
    %c0_30 = arith.constant 0 : index
    %c0_31 = arith.constant 0 : index
    %52 = vector.load %arg1[%c0_29, %c1, %c0_30, %c0_31] : memref<1x4x16x16xf32, #tpu.memory_space<vmem>>, vector<1x1x16x16xf32>
    %53 = vector.shape_cast %52 : vector<1x1x16x16xf32> to vector<16x16xf32>
    %cst_32 = arith.constant 5.870000e-01 : f32
    %54 = vector.broadcast %cst_32 : f32 to vector<16x16xf32>
    %55 = arith.mulf %54, %53 : vector<16x16xf32>
    %56 = arith.addf %51, %55 : vector<16x16xf32>
    %c0_33 = arith.constant 0 : index
    %c2 = arith.constant 2 : index
    %c0_34 = arith.constant 0 : index
    %c0_35 = arith.constant 0 : index
    %57 = vector.load %arg1[%c0_33, %c2, %c0_34, %c0_35] : memref<1x4x16x16xf32, #tpu.memory_space<vmem>>, vector<1x1x16x16xf32>
    %58 = vector.shape_cast %57 : vector<1x1x16x16xf32> to vector<16x16xf32>
    %cst_36 = arith.constant 1.140000e-01 : f32
    %59 = vector.broadcast %cst_36 : f32 to vector<16x16xf32>
    %60 = arith.mulf %59, %58 : vector<16x16xf32>
    %61 = arith.addf %56, %60 : vector<16x16xf32>
    %c15_i32 = arith.constant 15 : i32
    %62 = tpu.dynamic_rotate %61 by %c15_i32 dim 1 : vector<16x16xf32>, i32 -> vector<16x16xf32>
    %c15_i32_37 = arith.constant 15 : i32
    %63 = vector.broadcast %c15_i32_37 : i32 to vector<16x16xi32>
    %64 = arith.cmpi slt, %47, %63 : vector<16x16xi32>
    %cst_38 = arith.constant 0.000000e+00 : f32
    %65 = vector.broadcast %cst_38 : f32 to vector<16x16xf32>
    %66 = arith.select %64, %62, %65 : vector<16x16xi1>, vector<16x16xf32>
    %c1_i32_39 = arith.constant 1 : i32
    %67 = tpu.dynamic_rotate %61 by %c1_i32_39 dim 1 : vector<16x16xf32>, i32 -> vector<16x16xf32>
    %c1_i32_40 = arith.constant 1 : i32
    %68 = vector.broadcast %c1_i32_40 : i32 to vector<16x16xi32>
    %69 = arith.cmpi sge, %47, %68 : vector<16x16xi32>
    %cst_41 = arith.constant 0.000000e+00 : f32
    %70 = vector.broadcast %cst_41 : f32 to vector<16x16xf32>
    %71 = arith.select %69, %67, %70 : vector<16x16xi1>, vector<16x16xf32>
    %72 = arith.subf %66, %71 : vector<16x16xf32>
    %cst_42 = arith.constant 2.000000e+00 : f32
    %73 = vector.broadcast %cst_42 : f32 to vector<16x16xf32>
    %74 = arith.mulf %73, %61 : vector<16x16xf32>
    %75 = arith.addf %71, %74 : vector<16x16xf32>
    %76 = arith.addf %75, %66 : vector<16x16xf32>
    %c1_i32_43 = arith.constant 1 : i32
    %77 = tpu.dynamic_rotate %72 by %c1_i32_43 dim 0 : vector<16x16xf32>, i32 -> vector<16x16xf32>
    %c1_i32_44 = arith.constant 1 : i32
    %78 = vector.broadcast %c1_i32_44 : i32 to vector<16x16xi32>
    %79 = arith.cmpi sge, %46, %78 : vector<16x16xi32>
    %cst_45 = arith.constant 0.000000e+00 : f32
    %80 = vector.broadcast %cst_45 : f32 to vector<16x16xf32>
    %81 = arith.select %79, %77, %80 : vector<16x16xi1>, vector<16x16xf32>
    %cst_46 = arith.constant 2.000000e+00 : f32
    %82 = vector.broadcast %cst_46 : f32 to vector<16x16xf32>
    %83 = arith.mulf %82, %72 : vector<16x16xf32>
    %84 = arith.addf %81, %83 : vector<16x16xf32>
    %c15_i32_47 = arith.constant 15 : i32
    %85 = tpu.dynamic_rotate %72 by %c15_i32_47 dim 0 : vector<16x16xf32>, i32 -> vector<16x16xf32>
    %c15_i32_48 = arith.constant 15 : i32
    %86 = vector.broadcast %c15_i32_48 : i32 to vector<16x16xi32>
    %87 = arith.cmpi slt, %46, %86 : vector<16x16xi32>
    %cst_49 = arith.constant 0.000000e+00 : f32
    %88 = vector.broadcast %cst_49 : f32 to vector<16x16xf32>
    %89 = arith.select %87, %85, %88 : vector<16x16xi1>, vector<16x16xf32>
    %90 = arith.addf %84, %89 : vector<16x16xf32>
    %c15_i32_50 = arith.constant 15 : i32
    %91 = tpu.dynamic_rotate %76 by %c15_i32_50 dim 0 : vector<16x16xf32>, i32 -> vector<16x16xf32>
    %c15_i32_51 = arith.constant 15 : i32
    %92 = vector.broadcast %c15_i32_51 : i32 to vector<16x16xi32>
    %93 = arith.cmpi slt, %46, %92 : vector<16x16xi32>
    %cst_52 = arith.constant 0.000000e+00 : f32
    %94 = vector.broadcast %cst_52 : f32 to vector<16x16xf32>
    %95 = arith.select %93, %91, %94 : vector<16x16xi1>, vector<16x16xf32>
    %c1_i32_53 = arith.constant 1 : i32
    %96 = tpu.dynamic_rotate %76 by %c1_i32_53 dim 0 : vector<16x16xf32>, i32 -> vector<16x16xf32>
    %c1_i32_54 = arith.constant 1 : i32
    %97 = vector.broadcast %c1_i32_54 : i32 to vector<16x16xi32>
    %98 = arith.cmpi sge, %46, %97 : vector<16x16xi32>
    %cst_55 = arith.constant 0.000000e+00 : f32
    %99 = vector.broadcast %cst_55 : f32 to vector<16x16xf32>
    %100 = arith.select %98, %96, %99 : vector<16x16xi1>, vector<16x16xf32>
    %101 = arith.subf %95, %100 : vector<16x16xf32>
    %102 = arith.mulf %90, %90 : vector<16x16xf32>
    %103 = arith.mulf %101, %101 : vector<16x16xf32>
    %104 = arith.addf %102, %103 : vector<16x16xf32>
    %105 = math.sqrt %104 : vector<16x16xf32>
    %c0_56 = arith.constant 0 : index
    %c0_57 = arith.constant 0 : index
    %c0_58 = arith.constant 0 : index
    %c0_59 = arith.constant 0 : index
    %106 = vector.load %arg2[%c0_56, %c0_57, %c0_58, %c0_59] : memref<1x4x16x16xf32, #tpu.memory_space<vmem>>, vector<1x1x16x16xf32>
    %107 = vector.shape_cast %106 : vector<1x1x16x16xf32> to vector<16x16xf32>
    %cst_60 = arith.constant 2.990000e-01 : f32
    %108 = vector.broadcast %cst_60 : f32 to vector<16x16xf32>
    %109 = arith.mulf %108, %107 : vector<16x16xf32>
    %c0_61 = arith.constant 0 : index
    %c1_62 = arith.constant 1 : index
    %c0_63 = arith.constant 0 : index
    %c0_64 = arith.constant 0 : index
    %110 = vector.load %arg2[%c0_61, %c1_62, %c0_63, %c0_64] : memref<1x4x16x16xf32, #tpu.memory_space<vmem>>, vector<1x1x16x16xf32>
    %111 = vector.shape_cast %110 : vector<1x1x16x16xf32> to vector<16x16xf32>
    %cst_65 = arith.constant 5.870000e-01 : f32
    %112 = vector.broadcast %cst_65 : f32 to vector<16x16xf32>
    %113 = arith.mulf %112, %111 : vector<16x16xf32>
    %114 = arith.addf %109, %113 : vector<16x16xf32>
    %c0_66 = arith.constant 0 : index
    %c2_67 = arith.constant 2 : index
    %c0_68 = arith.constant 0 : index
    %c0_69 = arith.constant 0 : index
    %115 = vector.load %arg2[%c0_66, %c2_67, %c0_68, %c0_69] : memref<1x4x16x16xf32, #tpu.memory_space<vmem>>, vector<1x1x16x16xf32>
    %116 = vector.shape_cast %115 : vector<1x1x16x16xf32> to vector<16x16xf32>
    %cst_70 = arith.constant 1.140000e-01 : f32
    %117 = vector.broadcast %cst_70 : f32 to vector<16x16xf32>
    %118 = arith.mulf %117, %116 : vector<16x16xf32>
    %119 = arith.addf %114, %118 : vector<16x16xf32>
    %c15_i32_71 = arith.constant 15 : i32
    %120 = tpu.dynamic_rotate %119 by %c15_i32_71 dim 1 : vector<16x16xf32>, i32 -> vector<16x16xf32>
    %c15_i32_72 = arith.constant 15 : i32
    %121 = vector.broadcast %c15_i32_72 : i32 to vector<16x16xi32>
    %122 = arith.cmpi slt, %47, %121 : vector<16x16xi32>
    %cst_73 = arith.constant 0.000000e+00 : f32
    %123 = vector.broadcast %cst_73 : f32 to vector<16x16xf32>
    %124 = arith.select %122, %120, %123 : vector<16x16xi1>, vector<16x16xf32>
    %c1_i32_74 = arith.constant 1 : i32
    %125 = tpu.dynamic_rotate %119 by %c1_i32_74 dim 1 : vector<16x16xf32>, i32 -> vector<16x16xf32>
    %c1_i32_75 = arith.constant 1 : i32
    %126 = vector.broadcast %c1_i32_75 : i32 to vector<16x16xi32>
    %127 = arith.cmpi sge, %47, %126 : vector<16x16xi32>
    %cst_76 = arith.constant 0.000000e+00 : f32
    %128 = vector.broadcast %cst_76 : f32 to vector<16x16xf32>
    %129 = arith.select %127, %125, %128 : vector<16x16xi1>, vector<16x16xf32>
    %130 = arith.subf %124, %129 : vector<16x16xf32>
    %cst_77 = arith.constant 2.000000e+00 : f32
    %131 = vector.broadcast %cst_77 : f32 to vector<16x16xf32>
    %132 = arith.mulf %131, %119 : vector<16x16xf32>
    %133 = arith.addf %129, %132 : vector<16x16xf32>
    %134 = arith.addf %133, %124 : vector<16x16xf32>
    %c1_i32_78 = arith.constant 1 : i32
    %135 = tpu.dynamic_rotate %130 by %c1_i32_78 dim 0 : vector<16x16xf32>, i32 -> vector<16x16xf32>
    %c1_i32_79 = arith.constant 1 : i32
    %136 = vector.broadcast %c1_i32_79 : i32 to vector<16x16xi32>
    %137 = arith.cmpi sge, %46, %136 : vector<16x16xi32>
    %cst_80 = arith.constant 0.000000e+00 : f32
    %138 = vector.broadcast %cst_80 : f32 to vector<16x16xf32>
    %139 = arith.select %137, %135, %138 : vector<16x16xi1>, vector<16x16xf32>
    %cst_81 = arith.constant 2.000000e+00 : f32
    %140 = vector.broadcast %cst_81 : f32 to vector<16x16xf32>
    %141 = arith.mulf %140, %130 : vector<16x16xf32>
    %142 = arith.addf %139, %141 : vector<16x16xf32>
    %c15_i32_82 = arith.constant 15 : i32
    %143 = tpu.dynamic_rotate %130 by %c15_i32_82 dim 0 : vector<16x16xf32>, i32 -> vector<16x16xf32>
    %c15_i32_83 = arith.constant 15 : i32
    %144 = vector.broadcast %c15_i32_83 : i32 to vector<16x16xi32>
    %145 = arith.cmpi slt, %46, %144 : vector<16x16xi32>
    %cst_84 = arith.constant 0.000000e+00 : f32
    %146 = vector.broadcast %cst_84 : f32 to vector<16x16xf32>
    %147 = arith.select %145, %143, %146 : vector<16x16xi1>, vector<16x16xf32>
    %148 = arith.addf %142, %147 : vector<16x16xf32>
    %c15_i32_85 = arith.constant 15 : i32
    %149 = tpu.dynamic_rotate %134 by %c15_i32_85 dim 0 : vector<16x16xf32>, i32 -> vector<16x16xf32>
    %c15_i32_86 = arith.constant 15 : i32
    %150 = vector.broadcast %c15_i32_86 : i32 to vector<16x16xi32>
    %151 = arith.cmpi slt, %46, %150 : vector<16x16xi32>
    %cst_87 = arith.constant 0.000000e+00 : f32
    %152 = vector.broadcast %cst_87 : f32 to vector<16x16xf32>
    %153 = arith.select %151, %149, %152 : vector<16x16xi1>, vector<16x16xf32>
    %c1_i32_88 = arith.constant 1 : i32
    %154 = tpu.dynamic_rotate %134 by %c1_i32_88 dim 0 : vector<16x16xf32>, i32 -> vector<16x16xf32>
    %c1_i32_89 = arith.constant 1 : i32
    %155 = vector.broadcast %c1_i32_89 : i32 to vector<16x16xi32>
    %156 = arith.cmpi sge, %46, %155 : vector<16x16xi32>
    %cst_90 = arith.constant 0.000000e+00 : f32
    %157 = vector.broadcast %cst_90 : f32 to vector<16x16xf32>
    %158 = arith.select %156, %154, %157 : vector<16x16xi1>, vector<16x16xf32>
    %159 = arith.subf %153, %158 : vector<16x16xf32>
    %160 = arith.mulf %148, %148 : vector<16x16xf32>
    %161 = arith.mulf %159, %159 : vector<16x16xf32>
    %162 = arith.addf %160, %161 : vector<16x16xf32>
    %163 = math.sqrt %162 : vector<16x16xf32>
    %164 = arith.subf %105, %163 : vector<16x16xf32>
    %cst_91 = arith.constant 1.000000e-01 : f32
    %165 = vector.broadcast %cst_91 : f32 to vector<16x16xf32>
    %166 = arith.mulf %165, %45 : vector<16x16xf32>
    %167 = arith.addf %43, %166 : vector<16x16xf32>
    %cst_92 = arith.constant 4.8828125E-4 : f32
    %168 = vector.broadcast %cst_92 : f32 to vector<16x16xf32>
    %169 = arith.mulf %168, %167 : vector<16x16xf32>
    %170 = arith.mulf %164, %164 : vector<16x16xf32>
    %cst_93 = arith.constant 3.906250e-04 : f32
    %171 = vector.broadcast %cst_93 : f32 to vector<16x16xf32>
    %172 = arith.mulf %171, %170 : vector<16x16xf32>
    %173 = arith.addf %169, %172 : vector<16x16xf32>
    %174 = vector.shape_cast %173 : vector<16x16xf32> to vector<1x16x16xf32>
    %cst_94 = arith.constant dense<0.000000e+00> : vector<1xf32>
    %175 = vector.multi_reduction <add>, %174, %cst_94 [1, 2] : vector<1x16x16xf32> to vector<1xf32>
    %176 = vector.shape_cast %175 : vector<1xf32> to vector<1x1x1xf32>
    %177 = vector.extract %176[0, 0, 0] : f32 from vector<1x1x1xf32>
    %178 = vector.broadcast %177 : f32 to vector<1x1xf32>
    %179 = vector.shape_cast %178 : vector<1x1xf32> to vector<1x1x1xf32>
    %180 = vector.shape_cast %179 : vector<1x1x1xf32> to vector<1x1x1xf32>
    %181 = vector.broadcast %180 : vector<1x1x1xf32> to vector<1x8x128xf32>
    %c0_95 = arith.constant 0 : index
    %c0_96 = arith.constant 0 : index
    %c0_97 = arith.constant 0 : index
    %182 = vector.load %arg3[%c0_95, %c0_96, %c0_97] : memref<1x8x128xf32, #tpu.memory_space<vmem>>, vector<1x8x128xf32>
    tpu.vector_store %arg3[%c0_95, %c0_96, %c0_97], %181 {strides = array<i32>} : memref<1x8x128xf32, #tpu.memory_space<vmem>>, vector<1x8x128xf32>,
    return
  }
  func.func @transform_0(%arg0: i32) -> (i32, i32, i32, i32) {
    %c0_i32 = arith.constant 0 : i32
    %c0_i32_0 = arith.constant 0 : i32
    %c0_i32_1 = arith.constant 0 : i32
    %c0_i32_2 = arith.constant 0 : i32
    return %arg0, %c0_i32, %c0_i32_0, %c0_i32_1 : i32, i32, i32, i32
  }
  func.func @transform_1(%arg0: i32) -> (i32, i32, i32, i32) {
    %c0_i32 = arith.constant 0 : i32
    %c0_i32_0 = arith.constant 0 : i32
    %c0_i32_1 = arith.constant 0 : i32
    %c0_i32_2 = arith.constant 0 : i32
    return %arg0, %c0_i32, %c0_i32_0, %c0_i32_1 : i32, i32, i32, i32
  }
  func.func @transform_2(%arg0: i32) -> (i32, i32, i32) {
    %c0_i32 = arith.constant 0 : i32
    %c0_i32_0 = arith.constant 0 : i32
    %c0_i32_1 = arith.constant 0 : i32
    return %arg0, %c0_i32, %c0_i32_0 : i32, i32, i32
  }
}

</mosaic_0001>

<llo_original>
// kernel: tpu_custom_call.1
$region0: #{tpu_custom_call.1}
  #allocation0 [shape = 'u32[]', space=smem, size = 0x4, offset = 0x4, fixed_abs, tag = 'smem constant byte address 0x4 - core index']
  #allocation1 [shape = 'u32[72,128]{1,0:T(1,128)}', space=vmem, size = 0x9000, scoped, tag = 'internal scratch']
  %s0 = inlined_call_operand.hbm [shape: f32[2,4,16,16], index: 0, kind: input, shape index: {}]
  %s1 = inlined_call_operand.hbm [shape: f32[2,4,16,16], index: 1, kind: input, shape index: {}]
  %s2 = inlined_call_operand.hbm [shape: f32[2,8,128], index: 2, kind: output, shape index: {}]
  %s3 = sld [smem:[#allocation0]]
  $region49: #{tpu_custom_call.1} parent=0
    _
  %s5 = ssub.s32 1, %s3
  %s6 = scalar_select 0, %s5, %s3
  $region1: #{tpu_custom_call.1} parent=0
    #allocation2 [shape = 'u8[65536]{0}', space=vmem, size = 0x10000, scoped, tag = 'input window, operand 0']
    #allocation3 [shape = 's32[2]{0}', space=sflag, size = 0x8, scoped, tag = 'scoped memory for tpu_custom_call.1']
    #allocation4 [shape = 's32[2]{0}', space=sflag, size = 0x8, scoped, tag = 'scoped memory for tpu_custom_call.1']
    #allocation5 [shape = 'u8[65536]{0}', space=vmem, size = 0x10000, scoped, tag = 'input window, operand 1']
    #allocation6 [shape = 's32[2]{0}', space=sflag, size = 0x8, scoped, tag = 'scoped memory for tpu_custom_call.1']
    #allocation7 [shape = 'u8[8192]{0}', space=vmem, size = 0x2000, scoped, tag = 'output window, operand 0']
    %7 = vsyncpa [#allocation3], 0
    %s8 = scalar_lea.sflag [#allocation3], 1
    %9 = vsyncpa %s8, 0
    %10 = vsyncpa [#allocation6], 0
    %s11 = scalar_lea.sflag [#allocation6], 1
    %12 = vsyncpa %s11, 0
    %13 = vsyncpa [#allocation4], 0
    %s14 = scalar_lea.sflag [#allocation4], 1
    %15 = vsyncpa %s14, 0
    loop: start=0, step=1, limit=4
    $region2: #{tpu_custom_call.1} parent=1 // loop_pre_header
      _
    $region3: #{tpu_custom_call.1} parent=1 // loop_header
      %s17 = sphi 0, %s21
      %p18 = scmp.ge.s32.totalorder %s17, 4
      %s27 = sphi 0, %s29
      %s30 = sphi 0, %s27
      %s31 = sphi 0, %s30
      %s47 = sphi 0, %s31
      %s53 = sphi 0, %s55
      %s56 = sphi 0, %s53
      %s57 = sphi 0, %s56
      %s73 = sphi 0, %s57
      %s79 = sphi 0, %s81
      %s82 = sphi 0, %s79
      %s83 = sphi 0, %s82
      %s99 = sphi 0, %s83
    $region4: #{tpu_custom_call.1} parent=1 // loop_header_branch
      %20 = sbr.rel (%p18) target = $region8
    $region5: #{tpu_custom_call.1} parent=1 // loop_body
      %s22 = ssub.s32 %s17, 1
      %s23 = ssub.s32 %s17, 2
      %s24 = sadd.s32 %s17, 1
      %s25 = ssub.s32 %s17, %s24
      %p26 = scmp.eq.s32.totalorder %s25, 0
      %s28 = sadd.s32 %s27, 1
      %s29 = scalar_select %p26, %s27, %s28
      %p32 = pneg %p26
      %p33 = scmp.eq.s32.totalorder %s17, 1
      %p34 = por %p32, %p33
      %p35 = scmp.ne.s32.totalorder %s27, %s30
      %p36 = scmp.eq.s32.totalorder %s17, 0
      %p37 = por %p35, %p36
      %p38 = scmp.ne.s32.totalorder %s27, %s30
      %p39 = scmp.eq.s32.totalorder %s22, 1
      %p40 = por %p38, %p39
      %p41 = scmp.ne.s32.totalorder %s30, %s31
      %p42 = scmp.eq.s32.totalorder %s22, 0
      %p43 = por %p41, %p42
      %p44 = scmp.ne.s32.totalorder %s30, %s31
      %p45 = scmp.eq.s32.totalorder %s23, 1
      %p46 = por %p44, %p45
      %p48 = scmp.ne.s32.totalorder %s31, %s47
      %p49 = scmp.eq.s32.totalorder %s23, 0
      %p50 = por %p48, %p49
      %s51 = ssub.s32 %s17, %s24
      %p52 = scmp.eq.s32.totalorder %s51, 0
      %s54 = sadd.s32 %s53, 1
      %s55 = scalar_select %p52, %s53, %s54
      %p58 = pneg %p52
      %p59 = scmp.eq.s32.totalorder %s17, 1
      %p60 = por %p58, %p59
      %p61 = scmp.ne.s32.totalorder %s53, %s56
      %p62 = scmp.eq.s32.totalorder %s17, 0
      %p63 = por %p61, %p62
      %p64 = scmp.ne.s32.totalorder %s53, %s56
      %p65 = scmp.eq.s32.totalorder %s22, 1
      %p66 = por %p64, %p65
      %p67 = scmp.ne.s32.totalorder %s56, %s57
      %p68 = scmp.eq.s32.totalorder %s22, 0
      %p69 = por %p67, %p68
      %p70 = scmp.ne.s32.totalorder %s56, %s57
      %p71 = scmp.eq.s32.totalorder %s23, 1
      %p72 = por %p70, %p71
      %p74 = scmp.ne.s32.totalorder %s57, %s73
      %p75 = scmp.eq.s32.totalorder %s23, 0
      %p76 = por %p74, %p75
      %s77 = ssub.s32 %s17, %s24
      %p78 = scmp.eq.s32.totalorder %s77, 0
      %s80 = sadd.s32 %s79, 1
      %s81 = scalar_select %p78, %s79, %s80
      %p84 = pneg %p78
      %p85 = scmp.eq.s32.totalorder %s17, 1
      %p86 = por %p84, %p85
      %p87 = scmp.ne.s32.totalorder %s79, %s82
      %p88 = scmp.eq.s32.totalorder %s17, 0
      %p89 = por %p87, %p88
      %p90 = scmp.ne.s32.totalorder %s79, %s82
      %p91 = scmp.eq.s32.totalorder %s22, 1
      %p92 = por %p90, %p91
      %p93 = scmp.ne.s32.totalorder %s82, %s83
      %p94 = scmp.eq.s32.totalorder %s22, 0
      %p95 = por %p93, %p94
      %p96 = scmp.ne.s32.totalorder %s82, %s83
      %p97 = scmp.eq.s32.totalorder %s23, 1
      %p98 = por %p96, %p97
      %p100 = scmp.ne.s32.totalorder %s83, %s99
      %p101 = scmp.eq.s32.totalorder %s23, 0
      %p102 = por %p100, %p101
      %p103 = scmp.le.s32.totalorder 1, %s17
      %p104 = scmp.lt.s32.totalorder %s17, 3
      %p105 = pnand %p103, %p104
      %p106 = pneg %p105
      // Predicated region
      $region9: #{tpu_custom_call.1} parent=5 // pred_check
        _
      $region10: #{tpu_custom_call.1} parent=5 // pred_check_branch
        %108 = sbr.rel (%p105) target = $region12
      $region11: #{tpu_custom_call.1} parent=5 // pred_region
        %s109 = ssub.s32 %s17, 1
      $region12: #{tpu_custom_call.1} parent=5 // pred_fallthru
        _
      %p110 = scmp.lt.s32.totalorder %s17, 2
      // Predicated region
      $region13: #{tpu_custom_call.1} parent=5 // pred_check
        %p111 = pneg %p110
      $region14: #{tpu_custom_call.1} parent=5 // pred_check_branch
        %113 = sbr.rel (%p111) target = $region16
      $region15: #{tpu_custom_call.1} parent=5 // pred_region
        // Predicated region
        $region17: #{tpu_custom_call.1} parent=15 // pred_check
          %p114 = pneg %p37
        $region18: #{tpu_custom_call.1} parent=15 // pred_check_branch
          %116 = sbr.rel (%p114) target = $region20
        $region19: #{tpu_custom_call.1} parent=15 // pred_region
          %s117 = sand.u32 %s27, 1
          %s118 = scalar_lea.sflag [#allocation3], %s117
          %s119 = sand.u32 %s27, 1
          %s120 = smul.addr %s119, 64
          %s121 = scalar_lea.vmem [#allocation2], %s120
          %123 = vsyncadd %s118, 0
          %s124 = smul.addr %s17, 8
          %s125 = smul.addr %s124, 8
          %s126 = scalar_lea.hbm %s0, %s125
          %s127 = sshll.u32 %s126, 4
          %s128 = int_to_ptr.hbm [resolvable:$true] %s127
          %s129 = sshll.u32 %s121, 4
          %s130 = int_to_ptr.vmem [resolvable:$true] %s129
          %135 = dma.hbm_to_vmem [thread:$0]  %s128, 1024, %s130, %s118, 128, 128, 8
        $region20: #{tpu_custom_call.1} parent=15 // pred_fallthru
          _
        // Predicated region
        $region21: #{tpu_custom_call.1} parent=15 // pred_check
          %p136 = pneg %p63
        $region22: #{tpu_custom_call.1} parent=15 // pred_check_branch
          %138 = sbr.rel (%p136) target = $region24
        $region23: #{tpu_custom_call.1} parent=15 // pred_region
          %s139 = sand.u32 %s53, 1
          %s140 = scalar_lea.sflag [#allocation6], %s139
          %s141 = sand.u32 %s53, 1
          %s142 = smul.addr %s141, 64
          %s143 = scalar_lea.vmem [#allocation5], %s142
          %145 = vsyncadd %s140, 0
          %s146 = smul.addr %s17, 8
          %s147 = smul.addr %s146, 8
          %s148 = scalar_lea.hbm %s1, %s147
          %s149 = sshll.u32 %s148, 4
          %s150 = int_to_ptr.hbm [resolvable:$true] %s149
          %s151 = sshll.u32 %s143, 4
          %s152 = int_to_ptr.vmem [resolvable:$true] %s151
          %157 = dma.hbm_to_vmem [thread:$0]  %s150, 1024, %s152, %s140, 128, 128, 8
        $region24: #{tpu_custom_call.1} parent=15 // pred_fallthru
          _
      $region16: #{tpu_custom_call.1} parent=5 // pred_fallthru
        _
      %p158 = scmp.le.s32.totalorder 1, %s17
      %p159 = scmp.lt.s32.totalorder %s17, 3
      %p160 = pnand %p158, %p159
      %p161 = pneg %p160
      // Predicated region
      $region25: #{tpu_custom_call.1} parent=5 // pred_check
        _
      $region26: #{tpu_custom_call.1} parent=5 // pred_check_branch
        %163 = sbr.rel (%p160) target = $region28
      $region27: #{tpu_custom_call.1} parent=5 // pred_region
        %s164 = ssub.s32 %s17, 1
        %s165 = sand.u32 %s30, 1
        %s166 = scalar_lea.sflag [#allocation3], %s165
        %s167 = sand.u32 %s30, 1
        %s168 = smul.addr %s167, 64
        %s169 = scalar_lea.vmem [#allocation2], %s168
        // Predicated region
        $region29: #{tpu_custom_call.1} parent=27 // pred_check
          %p170 = pneg %p43
        $region30: #{tpu_custom_call.1} parent=27 // pred_check_branch
          %172 = sbr.rel (%p170) target = $region32
        $region31: #{tpu_custom_call.1} parent=27 // pred_region
          %174 = dma.done %s166, 1024
        $region32: #{tpu_custom_call.1} parent=27 // pred_fallthru
          _
        %s175 = sand.u32 %s56, 1
        %s176 = scalar_lea.sflag [#allocation6], %s175
        %s177 = sand.u32 %s56, 1
        %s178 = smul.addr %s177, 64
        %s179 = scalar_lea.vmem [#allocation5], %s178
        // Predicated region
        $region33: #{tpu_custom_call.1} parent=27 // pred_check
          %p180 = pneg %p69
        $region34: #{tpu_custom_call.1} parent=27 // pred_check_branch
          %182 = sbr.rel (%p180) target = $region36
        $region35: #{tpu_custom_call.1} parent=27 // pred_region
          %184 = dma.done %s176, 1024
        $region36: #{tpu_custom_call.1} parent=27 // pred_fallthru
          _
        %s185 = sand.u32 %s30, 1
        %s186 = scalar_lea.sflag [#allocation3], %s185
        %s187 = sand.u32 %s30, 1
        %s188 = smul.addr %s187, 64
        %s189 = scalar_lea.vmem [#allocation2], %s188
        %p190 = pneg %p43
        %p191 = pneg %p40
        %s192 = sand.u32 %s56, 1
        %s193 = scalar_lea.sflag [#allocation6], %s192
        %s194 = sand.u32 %s56, 1
        %s195 = smul.addr %s194, 64
        %s196 = scalar_lea.vmem [#allocation5], %s195
        %p197 = pneg %p69
        %p198 = pneg %p66
        %p199 = pneg %p95
        %p200 = pneg %p92
        %s201 = sand.u32 %s82, 1
        %s202 = scalar_lea.sflag [#allocation4], %s201
        %s203 = sand.u32 %s82, 1
        %s204 = smul.addr %s203, 8
        %s205 = scalar_lea.vmem [#allocation7], %s204
        %v206 = vld [vmem:[%s169] sm:$0xff]
        %v207 = vld [vmem:[%s169 + $0x8] sm:$0xff]
        %v208 = vld [vmem:[%s179] sm:$0xff]
        %v209 = vld [vmem:[%s179 + $0x8] sm:$0xff]
        %v210 = vsub.f32 %v206, %v208
        %v211 = vsub.f32 %v207, %v209
        %v212 = vmul.f32 %v210, %v210
        %v213 = vmul.f32 %v211, %v211
        %v214 = vadd.f32 %v212, 0.0
        %v215 = vadd.f32 %v213, 0.0
        %v216 = vand.u32 2147483647, %v210
        %v217 = vand.u32 2147483647, %v211
        %v218 = vadd.f32 %v216, 0.0
        %v219 = vadd.f32 %v217, 0.0
        %s220 = scalar_lea.vmem %s169, 16 [#allocation2]
        %v221 = vld [vmem:[%s220] sm:$0xff]
        %v222 = vld [vmem:[%s220 + $0x8] sm:$0xff]
        %s223 = scalar_lea.vmem %s179, 16 [#allocation5]
        %v224 = vld [vmem:[%s223] sm:$0xff]
        %v225 = vld [vmem:[%s223 + $0x8] sm:$0xff]
        %v226 = vsub.f32 %v221, %v224
        %v227 = vsub.f32 %v222, %v225
        %v228 = vmul.f32 %v226, %v226
        %v229 = vmul.f32 %v227, %v227
        %v230 = vadd.f32 %v214, %v228
        %v231 = vadd.f32 %v215, %v229
        %v232 = vand.u32 2147483647, %v226
        %v233 = vand.u32 2147483647, %v227
        %v234 = vadd.f32 %v218, %v232
        %v235 = vadd.f32 %v219, %v233
        %s236 = scalar_lea.vmem %s169, 32 [#allocation2]
        %v237 = vld [vmem:[%s236] sm:$0xff]
        %v238 = vld [vmem:[%s236 + $0x8] sm:$0xff]
        %s239 = scalar_lea.vmem %s179, 32 [#allocation5]
        %v240 = vld [vmem:[%s239] sm:$0xff]
        %v241 = vld [vmem:[%s239 + $0x8] sm:$0xff]
        %v242 = vsub.f32 %v237, %v240
        %v243 = vsub.f32 %v238, %v241
        %v244 = vmul.f32 %v242, %v242
        %v245 = vmul.f32 %v243, %v243
        %v246 = vadd.f32 %v230, %v244
        %v247 = vadd.f32 %v231, %v245
        %v248 = vand.u32 2147483647, %v242
        %v249 = vand.u32 2147483647, %v243
        %v250 = vadd.f32 %v234, %v248
        %v251 = vadd.f32 %v235, %v249
        %s252 = scalar_lea.vmem %s169, 48 [#allocation2]
        %v253 = vld [vmem:[%s252] sm:$0xff]
        %v254 = vld [vmem:[%s252 + $0x8] sm:$0xff]
        %s255 = scalar_lea.vmem %s179, 48 [#allocation5]
        %v256 = vld [vmem:[%s255] sm:$0xff]
        %v257 = vld [vmem:[%s255 + $0x8] sm:$0xff]
        %v258 = vsub.f32 %v253, %v256
        %v259 = vsub.f32 %v254, %v257
        %v260 = vmul.f32 %v258, %v258
        %v261 = vmul.f32 %v259, %v259
        %v262 = vadd.f32 %v246, %v260
        %v263 = vadd.f32 %v247, %v261
        %v264 = vand.u32 2147483647, %v258
        %v265 = vand.u32 2147483647, %v259
        %v266 = vadd.f32 %v250, %v264
        %v267 = vadd.f32 %v251, %v265
        %v268 = vlaneseq
        %v269 = vshrl.u32 %v268, 7
        %v270 = vadd.s32 %v269, 8
        %v271 = vlaneseq
        %v272 = vand.u32 %v271, 127
        %v273 = vmul.f32 %v206, 0.299
        %v274 = vmul.f32 %v207, 0.299
        %v275 = vmul.f32 %v221, 0.587
        %v276 = vmul.f32 %v222, 0.587
        %v277 = vadd.f32 %v273, %v275
        %v278 = vadd.f32 %v274, %v276
        %v279 = vmul.f32 %v237, 0.114
        %v280 = vmul.f32 %v238, 0.114
        %v281 = vadd.f32 %v277, %v279
        %v282 = vadd.f32 %v278, %v280
        %vm283 = vcmask 1047680
        %284 = vrot.lane.b32.xlu0 %v281, 16
        %v285 = vpop.permute.xlu0 %284
        %v286 = vsel %vm283, %v285, %v281
        %287 = vrot.lane.b32.xlu0 %v282, 16
        %v288 = vpop.permute.xlu0 %287
        %v289 = vsel %vm283, %v288, %v282
        %290 = vrot.lane.b32.xlu0 %v286, 16
        %v291 = vpop.permute.xlu0 %290
        %292 = vrot.lane.b32.xlu0 %v289, 16
        %v293 = vpop.permute.xlu0 %292
        %v294 = vsel %vm283, %v291, %v281
        %v295 = vsel %vm283, %v293, %v282
        %vm296 = vcmp.lt.s32.totalorder %v272, 15
        %299 = vrot.lane.b32.xlu0 %v294, 127
        %v300 = vpop.permute.xlu0 %299
        %301 = vrot.lane.b32.xlu0 %v295, 127
        %v302 = vpop.permute.xlu0 %301
        %v305 = vsel %vm296, %v300, 0.0
        %v306 = vsel %vm296, %v302, 0.0
        %vm307 = vcmp.ge.s32.totalorder %v272, 1
        %308 = vrot.lane.b32.xlu0 %v294, 113
        %v309 = vpop.permute.xlu0 %308
        %310 = vrot.lane.b32.xlu0 %v295, 113
        %v311 = vpop.permute.xlu0 %310
        %v314 = vsel %vm307, %v309, 0.0
        %v315 = vsel %vm307, %v311, 0.0
        %v316 = vsub.f32 %v305, %v314
        %v317 = vsub.f32 %v306, %v315
        %v318 = vmul.f32 %v281, 2.0
        %v319 = vmul.f32 %v282, 2.0
        %v320 = vadd.f32 %v314, %v318
        %v321 = vadd.f32 %v315, %v319
        %v322 = vadd.f32 %v320, %v305
        %v323 = vadd.f32 %v321, %v306
        %v324 = vrot.slane %v316, 7
        %v325 = vrot.slane %v317, 7
        %vm326 = vcmp.lt.s32.totalorder %v269, 1
        %v327 = vsel %vm326, %v324, %v325
        %v328 = vsel %vm326, %v325, %v324
        %vm329 = vcmp.ge.s32.totalorder %v269, 1
        %vm330 = vcmp.ge.s32.totalorder %v270, 1
        %v331 = vsel %vm329, %v328, 0.0
        %v332 = vsel %vm330, %v327, 0.0
        %v333 = vmul.f32 %v316, 2.0
        %v334 = vmul.f32 %v317, 2.0
        %v335 = vadd.f32 %v331, %v333
        %v336 = vadd.f32 %v332, %v334
        %v337 = vrot.slane %v316, 1
        %v338 = vrot.slane %v317, 1
        %vm339 = vcmp.lt.s32.totalorder %v269, 7
        %v340 = vsel %vm339, %v337, %v338
        %v341 = vsel %vm339, %v338, %v337
        %vm342 = vcmp.lt.s32.totalorder %v269, 15
        %vm343 = vcmp.lt.s32.totalorder %v270, 15
        %v344 = vsel %vm342, %v340, 0.0
        %v345 = vsel %vm343, %v341, 0.0
        %v346 = vadd.f32 %v335, %v344
        %v347 = vadd.f32 %v336, %v345
        %v348 = vrot.slane %v322, 1
        %v349 = vrot.slane %v323, 1
        %v350 = vsel %vm339, %v348, %v349
        %v351 = vsel %vm339, %v349, %v348
        %v352 = vsel %vm342, %v350, 0.0
        %v353 = vsel %vm343, %v351, 0.0
        %v354 = vrot.slane %v322, 7
        %v355 = vrot.slane %v323, 7
        %v356 = vsel %vm326, %v354, %v355
        %v357 = vsel %vm326, %v355, %v354
        %v358 = vsel %vm329, %v357, 0.0
        %v359 = vsel %vm330, %v356, 0.0
        %v360 = vsub.f32 %v352, %v358
        %v361 = vsub.f32 %v353, %v359
        %v362 = vmul.f32 %v346, %v346
        %v363 = vmul.f32 %v347, %v347
        %v364 = vmul.f32 %v360, %v360
        %v365 = vmul.f32 %v361, %v361
        %v366 = vadd.f32 %v362, %v364
        %v367 = vadd.f32 %v363, %v365
        %v368 = vrsqrt.pop %v366
        %v369 = vmul.f32 %v368, %v366
        %v370 = vmul.f32 %v369, %v368
        %v371 = vmul.f32 0.5, %v370
        %v372 = vsub.f32 1.5, %v371
        %v373 = vmul.f32 %v368, %v372
        %v374 = vmul.f32 %v366, %v373
        %vm375 = vcmp.eq.f32.partialorder %v366, inf
        %v376 = vsel %vm375, %v366, %v374
        %vm377 = vcmp.eq.f32.partialorder %v366, 0.0
        %v378 = vand.u32 %v366, 2147483648
        %v379 = vsel %vm377, %v378, %v376
        %v380 = vrsqrt.pop %v367
        %v381 = vmul.f32 %v380, %v367
        %v382 = vmul.f32 %v381, %v380
        %v383 = vmul.f32 0.5, %v382
        %v384 = vsub.f32 1.5, %v383
        %v385 = vmul.f32 %v380, %v384
        %v386 = vmul.f32 %v367, %v385
        %vm387 = vcmp.eq.f32.partialorder %v367, inf
        %v388 = vsel %vm387, %v367, %v386
        %vm389 = vcmp.eq.f32.partialorder %v367, 0.0
        %v390 = vand.u32 %v367, 2147483648
        %v391 = vsel %vm389, %v390, %v388
        %v392 = vmul.f32 %v208, 0.299
        %v393 = vmul.f32 %v209, 0.299
        %v394 = vmul.f32 %v224, 0.587
        %v395 = vmul.f32 %v225, 0.587
        %v396 = vadd.f32 %v392, %v394
        %v397 = vadd.f32 %v393, %v395
        %v398 = vmul.f32 %v240, 0.114
        %v399 = vmul.f32 %v241, 0.114
        %v400 = vadd.f32 %v396, %v398
        %v401 = vadd.f32 %v397, %v399
        %402 = vrot.lane.b32.xlu0 %v400, 16
        %v403 = vpop.permute.xlu0 %402
        %v404 = vsel %vm283, %v403, %v400
        %405 = vrot.lane.b32.xlu0 %v401, 16
        %v406 = vpop.permute.xlu0 %405
        %v407 = vsel %vm283, %v406, %v401
        %408 = vrot.lane.b32.xlu0 %v404, 16
        %v409 = vpop.permute.xlu0 %408
        %410 = vrot.lane.b32.xlu0 %v407, 16
        %v411 = vpop.permute.xlu0 %410
        %v412 = vsel %vm283, %v409, %v400
        %v413 = vsel %vm283, %v411, %v401
        %416 = vrot.lane.b32.xlu0 %v412, 127
        %v417 = vpop.permute.xlu0 %416
        %418 = vrot.lane.b32.xlu0 %v413, 127
        %v419 = vpop.permute.xlu0 %418
        %v422 = vsel %vm296, %v417, 0.0
        %v423 = vsel %vm296, %v419, 0.0
        %424 = vrot.lane.b32.xlu0 %v412, 113
        %v425 = vpop.permute.xlu0 %424
        %426 = vrot.lane.b32.xlu0 %v413, 113
        %v427 = vpop.permute.xlu0 %426
        %v430 = vsel %vm307, %v425, 0.0
        %v431 = vsel %vm307, %v427, 0.0
        %v432 = vsub.f32 %v422, %v430
        %v433 = vsub.f32 %v423, %v431
        %v434 = vmul.f32 %v400, 2.0
        %v435 = vmul.f32 %v401, 2.0
        %v436 = vadd.f32 %v430, %v434
        %v437 = vadd.f32 %v431, %v435
        %v438 = vadd.f32 %v436, %v422
        %v439 = vadd.f32 %v437, %v423
        %v440 = vrot.slane %v432, 7
        %v441 = vrot.slane %v433, 7
        %v442 = vsel %vm326, %v440, %v441
        %v443 = vsel %vm326, %v441, %v440
        %v444 = vsel %vm329, %v443, 0.0
        %v445 = vsel %vm330, %v442, 0.0
        %v446 = vmul.f32 %v432, 2.0
        %v447 = vmul.f32 %v433, 2.0
        %v448 = vadd.f32 %v444, %v446
        %v449 = vadd.f32 %v445, %v447
        %v450 = vrot.slane %v432, 1
        %v451 = vrot.slane %v433, 1
        %v452 = vsel %vm339, %v450, %v451
        %v453 = vsel %vm339, %v451, %v450
        %v454 = vsel %vm342, %v452, 0.0
        %v455 = vsel %vm343, %v453, 0.0
        %v456 = vadd.f32 %v448, %v454
        %v457 = vadd.f32 %v449, %v455
        %v458 = vrot.slane %v438, 1
        %v459 = vrot.slane %v439, 1
        %v460 = vsel %vm339, %v458, %v459
        %v461 = vsel %vm339, %v459, %v458
        %v462 = vsel %vm342, %v460, 0.0
        %v463 = vsel %vm343, %v461, 0.0
        %v464 = vrot.slane %v438, 7
        %v465 = vrot.slane %v439, 7
        %v466 = vsel %vm326, %v464, %v465
        %v467 = vsel %vm326, %v465, %v464
        %v468 = vsel %vm329, %v467, 0.0
        %v469 = vsel %vm330, %v466, 0.0
        %v470 = vsub.f32 %v462, %v468
        %v471 = vsub.f32 %v463, %v469
        %v472 = vmul.f32 %v456, %v456
        %v473 = vmul.f32 %v457, %v457
        %v474 = vmul.f32 %v470, %v470
        %v475 = vmul.f32 %v471, %v471
        %v476 = vadd.f32 %v472, %v474
        %v477 = vadd.f32 %v473, %v475
        %v478 = vrsqrt.pop %v476
        %v479 = vmul.f32 %v478, %v476
        %v480 = vmul.f32 %v479, %v478
        %v481 = vmul.f32 0.5, %v480
        %v482 = vsub.f32 1.5, %v481
        %v483 = vmul.f32 %v478, %v482
        %v484 = vmul.f32 %v476, %v483
        %vm485 = vcmp.eq.f32.partialorder %v476, inf
        %v486 = vsel %vm485, %v476, %v484
        %vm487 = vcmp.eq.f32.partialorder %v476, 0.0
        %v488 = vand.u32 %v476, 2147483648
        %v489 = vsel %vm487, %v488, %v486
        %v490 = vrsqrt.pop %v477
        %v491 = vmul.f32 %v490, %v477
        %v492 = vmul.f32 %v491, %v490
        %v493 = vmul.f32 0.5, %v492
        %v494 = vsub.f32 1.5, %v493
        %v495 = vmul.f32 %v490, %v494
        %v496 = vmul.f32 %v477, %v495
        %vm497 = vcmp.eq.f32.partialorder %v477, inf
        %v498 = vsel %vm497, %v477, %v496
        %vm499 = vcmp.eq.f32.partialorder %v477, 0.0
        %v500 = vand.u32 %v477, 2147483648
        %v501 = vsel %vm499, %v500, %v498
        %v502 = vsub.f32 %v379, %v489
        %v503 = vsub.f32 %v391, %v501
        %v504 = vmul.f32 %v266, 0.1
        %v505 = vmul.f32 %v267, 0.1
        %v506 = vadd.f32 %v262, %v504
        %v507 = vadd.f32 %v263, %v505
        %v508 = vmul.f32 %v506, 0.00048828125
        %v509 = vmul.f32 %v507, 0.00048828125
        %v510 = vmul.f32 %v502, %v502
        %v511 = vmul.f32 %v503, %v503
        %v512 = vmul.f32 %v510, 0.000390625
        %v513 = vmul.f32 %v511, 0.000390625
        %v514 = vadd.f32 %v508, %v512
        %v515 = vadd.f32 %v509, %v513
        %vm516 = vcmask 130048
        %v517 = vsel %vm516, %v514, 0.0
        %v518 = vsel %vm516, %v515, 0.0
        %v519 = vadd.f32 %v517, %v518
        %520 = vadd.xlane.f32.xlu0 %v519
        %v521 = vpop.xlane.xlu0 %520
        %v522 = vrot.slane %v521, 4
        %v523 = vadd.f32 %v521, %v522
        %v524 = vrot.slane %v523, 2
        %v525 = vadd.f32 %v523, %v524
        %v526 = vrot.slane %v525, 1
        %v527 = vadd.f32 %v525, %v526
        %s528 = vtos %v527
        %v529 = vstv %s528
        %530 = vst [vmem:[%s205] sm:$0xff] %v529
        %s531 = sand.u32 %s82, 1
        %s532 = scalar_lea.sflag [#allocation4], %s531
        %s533 = sand.u32 %s82, 1
        %s534 = smul.addr %s533, 8
        %s535 = scalar_lea.vmem [#allocation7], %s534
        // Predicated region
        $region37: #{tpu_custom_call.1} parent=27 // pred_check
          %p536 = pneg %p92
        $region38: #{tpu_custom_call.1} parent=27 // pred_check_branch
          %538 = sbr.rel (%p536) target = $region40
        $region39: #{tpu_custom_call.1} parent=27 // pred_region
          %540 = vsyncadd %s532, 0
          %s541 = smul.addr %s22, 8
          %s542 = scalar_lea.hbm %s2, %s541
          %s544 = sshll.u32 %s535, 4
          %s545 = int_to_ptr.vmem [resolvable:$true] %s544
          %s546 = sshll.u32 %s542, 4
          %s547 = int_to_ptr.hbm [resolvable:$true] %s546
          %549 = dma.vmem_to_hbm [thread:$0]  %s545, 128, %s547, %s532
        $region40: #{tpu_custom_call.1} parent=27 // pred_fallthru
          _
      $region28: #{tpu_custom_call.1} parent=5 // pred_fallthru
        _
      %p550 = scmp.le.s32.totalorder 2, %s17
      // Predicated region
      $region41: #{tpu_custom_call.1} parent=5 // pred_check
        %p551 = pneg %p550
      $region42: #{tpu_custom_call.1} parent=5 // pred_check_branch
        %553 = sbr.rel (%p551) target = $region44
      $region43: #{tpu_custom_call.1} parent=5 // pred_region
        %s554 = ssub.s32 %s17, 2
        // Predicated region
        $region45: #{tpu_custom_call.1} parent=43 // pred_check
          %p555 = pneg %p98
        $region46: #{tpu_custom_call.1} parent=43 // pred_check_branch
          %557 = sbr.rel (%p555) target = $region48
        $region47: #{tpu_custom_call.1} parent=43 // pred_region
          %s558 = sand.u32 %s83, 1
          %s559 = scalar_lea.sflag [#allocation4], %s558
          %s560 = sand.u32 %s83, 1
          %s561 = smul.addr %s560, 8
          %s562 = scalar_lea.vmem [#allocation7], %s561
          %564 = dma.done %s559, 128
        $region48: #{tpu_custom_call.1} parent=43 // pred_fallthru
          _
      $region44: #{tpu_custom_call.1} parent=5 // pred_fallthru
        _
    $region6: #{tpu_custom_call.1} parent=1 // loop_footer
      %s21 = sadd.s32 1, %s17
    $region7: #{tpu_custom_call.1} parent=1 // loop_footer_branch
      %16 = sbr.rel target = $region3
    $region8: #{tpu_custom_call.1} parent=1 // loop_exit
      _
    %565 = vsyncpa [#allocation3], 1
    %s566 = scalar_lea.sflag [#allocation3], 1
    %567 = vsyncpa %s566, 1
    %568 = vsyncpa [#allocation6], 1
    %s569 = scalar_lea.sflag [#allocation6], 1
    %570 = vsyncpa %s569, 1
    %571 = vsyncpa [#allocation4], 1
    %s572 = scalar_lea.sflag [#allocation4], 1
    %573 = vsyncpa %s572, 1

</llo_original>
